<compile_context>
chip_gen: v7x
topology: tpu7x:2x2x1
jax: 0.10.0
libtpu: 0.0.40
codegen_flags: <defaults>
</compile_context>

<pallas_src>
import functools

import jax
import jax.numpy as jnp
from jax import lax
from jax.experimental import pallas as pl
from jax.experimental.pallas import tpu as pltpu


def _round_up(x, m):
    return (x + m - 1) // m * m


def _pick_images_per_step(n, hp, *, target_rows=256, min_steps=2):
    """Largest divisor of n with imgs*hp <= target_rows, keeping >= min_steps grid steps."""
    divs = [d for d in range(1, n + 1) if n % d == 0]
    best = 1
    for d in divs:
        if d * hp <= target_rows:
            best = d
    while best > 1 and n // best < min_steps:
        best = max(d for d in divs if d < best)
    return best


# ---------------- Pallas kernel: maxpool + conv(+bias) + partial BN stats ----------------

def _pool_conv_stats_kernel(x_ref, w_ref, b_ref, y_ref, stats_ref, *, imgs, hp, kbp):
    # x_ref:     (4, imgs*Hp, KBp) f32   4 = the 2x2 pool partners; lanes = Wp*Cin (padded)
    # w_ref:     (3*KBp, LCp)      bf16  banded conv weight, ky-major along K (resident)
    # b_ref:     (1, LCp)          f32   conv bias tiled over Wp (zero in lane padding)
    # y_ref:     (imgs*Hp, LCp)    bf16  conv output (pre-BN), lane-dense
    # stats_ref: (1, 2, LCp)       f32   per-step [sum(y); sum(y*y)] over the rows
    r = imgs * hp
    v = x_ref[...]

    # --- 2x2 / stride-2 max-pool: three VPU maxes, single bf16 cast ---
    pooled = jnp.maximum(jnp.maximum(v[0], v[1]),
                         jnp.maximum(v[2], v[3])).astype(jnp.bfloat16)      # (R, KBp)

    # --- fused-K LHS: [pooled(hp-1) | pooled(hp) | pooled(hp+1)] per output row ---
    # vertical zero padding is per image (row shifts must not cross image boundaries)
    p3 = pooled.reshape(imgs, hp, kbp)
    zrow = jnp.zeros((imgs, 1, kbp), jnp.bfloat16)
    top = jnp.concatenate([zrow, p3[:, :hp - 1, :]], axis=1).reshape(r, kbp)   # ky = 0 tap
    bot = jnp.concatenate([p3[:, 1:, :], zrow], axis=1).reshape(r, kbp)        # ky = 2 tap
    lhs = jnp.concatenate([top, pooled, bot], axis=1)                          # (R, 3*KBp)

    # --- one MXU matmul (K = 3*KBp), f32 accumulation, + bias ---
    acc = jnp.dot(lhs, w_ref[...], preferred_element_type=jnp.float32) + b_ref[...]

    y_ref[...] = acc.astype(jnp.bfloat16)
    # partial BatchNorm statistics for this step (f32, reduced across steps in the wrapper)
    stats_ref[0, 0, :] = jnp.sum(acc, axis=0)
    stats_ref[0, 1, :] = jnp.sum(acc * acc, axis=0)


# ---------------- Wrapper ----------------

def downsample_forward(x_nchw, w, b, gamma, beta, *, eps=1e-5):
    N, Cin, H, W = x_nchw.shape
    Cout = w.shape[0]
    assert H % 2 == 0 and W % 2 == 0, "spatial dims must be even for 2x2 pooling"
    Hp, Wp = H // 2, W // 2
    assert Hp % 8 == 0, "Hp must be a multiple of 8 (TPU sublane tile)"

    KB = Wp * Cin                     # pooled lane width (conv contraction per ky tap)
    KBp = _round_up(KB, 16)           # bf16 sublane packing of the weight's K axis
    LC = Wp * Cout                    # conv-output lane width
    LCp = _round_up(LC, 128)          # lane-dense (unmasked) stores for y / stats

    imgs = _pick_images_per_step(N, Hp)
    G = N // imgs
    R = imgs * Hp

    # ---- layout glue: one transpose exposes all four 2x2 pool partners per output row ----
    x6 = x_nchw.reshape(N, Cin, Hp, 2, Wp, 2)
    x4 = jnp.transpose(x6, (0, 2, 3, 5, 4, 1)).reshape(N * Hp, 4, KB)
    x4 = jnp.transpose(x6, (3, 5, 0, 2, 4, 1)).reshape(4, N * Hp, KB)
    if KBp != KB:
        x4 = jnp.pad(x4, ((0, 0), (0, 0), (0, KBp - KB)))

    # ---- banded conv weight: rows (ky, wp_in*Cin+ci), cols (wp_out*Cout+co) ----
    # wb[ky*KBp + wp_in*Cin + ci, wp_out*Cout + co] = w[co, ci, ky, kx]  with
    # wp_in = wp_out + kx - 1; band truncation == horizontal zero padding.
    wt = jnp.transpose(w, (2, 3, 1, 0)).astype(jnp.float32)      # (ky, kx, Cin, Cout)
    wp_in = jnp.arange(Wp)[:, None]
    wp_out = jnp.arange(Wp)[None, :]
    blocks = []
    for ky in range(3):
        m = jnp.zeros((KBp, LCp), jnp.float32)
        for kx in range(3):
            sel = (wp_in == wp_out + (kx - 1)).astype(jnp.float32)         # (Wp, Wp)
            m = m.at[:KB, :LC].add(jnp.kron(sel, wt[ky, kx]))
        blocks.append(m)
    wb = jnp.concatenate(blocks, axis=0).astype(jnp.bfloat16)              # (3*KBp, LCp)
    b_row = jnp.zeros((1, LCp), jnp.float32).at[0, :LC].set(
        jnp.tile(b.astype(jnp.float32), Wp))

    # ---- fused maxpool + conv + partial-BN-stats kernel ----
    kernel = functools.partial(_pool_conv_stats_kernel, imgs=imgs, hp=Hp, kbp=KBp)
    y, stats = pl.pallas_call(
        kernel,
        out_shape=(jax.ShapeDtypeStruct((N * Hp, LCp), jnp.bfloat16),
                   jax.ShapeDtypeStruct((G, 2, LCp), jnp.float32)),
        grid=(G,),
        in_specs=[
            pl.BlockSpec((4, R, KBp), lambda i: (0, i, 0)),
            pl.BlockSpec((3 * KBp, LCp), lambda i: (0, 0)),   # resident across steps
            pl.BlockSpec((1, LCp), lambda i: (0, 0)),
        ],
        out_specs=(
            pl.BlockSpec((R, LCp), lambda i: (i, 0)),
            pl.BlockSpec((1, 2, LCp), lambda i: (i, 0, 0)),
        ),
        compiler_params=pltpu.CompilerParams(
            dimension_semantics=("parallel",),
            vmem_limit_bytes=32 * 1024 * 1024,
        ),
    )(x4, wb, b_row)

    # ---- BatchNorm batch statistics: tiny cross-step reduction, fold into scale/shift ----
    s = jnp.sum(stats, axis=0)[:, :LC].reshape(2, Wp, Cout).sum(axis=1)    # (2, Cout)
    count = N * Hp * Wp
    mean = s[0] / count
    var = jnp.maximum(s[1] / count - mean * mean, 0.0)                     # biased variance
    scale = gamma.astype(jnp.float32) / jnp.sqrt(var + eps)
    shift = beta.astype(jnp.float32) - mean * scale

    # ---- epilogue: scale/shift + ReLU fused by XLA with the NCHW transpose (one pass) ----
    y4 = y[:, :LC].reshape(N, Hp, Wp, Cout).astype(jnp.float32)
    out = jnp.maximum(y4 * scale + shift, 0.0)
    return jnp.transpose(out, (0, 3, 1, 2))                                # NCHW


# ---------------- Pure-JAX reference (f32, for sanity check) ----------------

def reference(x_nchw, w, b, gamma, beta):
    pooled = lax.reduce_window(x_nchw, -jnp.inf, lax.max,
                               (1, 1, 2, 2), (1, 1, 2, 2), 'VALID')
    y = lax.conv_general_dilated(pooled, w, (1, 1), ((1, 1), (1, 1)),
                                 dimension_numbers=('NCHW', 'OIHW', 'NCHW'))
    y = y + b.reshape(1, -1, 1, 1)
    mean = jnp.mean(y, axis=(0, 2, 3), keepdims=True)
    var = jnp.mean((y - mean) ** 2, axis=(0, 2, 3), keepdims=True)
    yhat = (y - mean) / jnp.sqrt(var + 1e-5)
    return jnp.maximum(gamma.reshape(1, -1, 1, 1) * yhat + beta.reshape(1, -1, 1, 1), 0.0)


if __name__ == "__main__":
    # Small shapes consistent with the module: batch=2, in_channels=4, out_channels=8, spatial=16
    N, Cin, Cout, H, W = 2, 4, 8, 16, 16

    key = jax.random.PRNGKey(0)
    k_x, k_w, k_b = jax.random.split(key, 3)
    x = jax.random.normal(k_x, (N, Cin, H, W), dtype=jnp.float32)

    # Deterministic synthetic parameters (no checkpoint).
    w = jax.random.normal(k_w, (Cout, Cin, 3, 3), dtype=jnp.float32) * 0.1
    b = jax.random.normal(k_b, (Cout,), dtype=jnp.float32) * 0.1
    gamma = jnp.ones((Cout,), dtype=jnp.float32)   # BatchNorm2d default weight init
    beta = jnp.zeros((Cout,), dtype=jnp.float32)   # BatchNorm2d default bias init

    out = jax.jit(downsample_forward)(x, w, b, gamma, beta)
    out = jax.block_until_ready(out)

    ref = reference(x, w, b, gamma, beta)
    assert out.shape == (N, Cout, H // 2, W // 2)
    # bf16 matmul inputs + bf16 y intermediate (f32 accumulation/stats) -> relaxed tolerance
    assert bool(jnp.allclose(out, ref, atol=2e-2, rtol=2e-2)), "mismatch vs reference"

    print("KERNEL_OK")
</pallas_src>

<mosaic_0001>
module attributes {stable_mosaic.version = 11 : i64} {
  func.func @_pool_conv_stats_kernel(%arg0: i32, %arg1: memref<4x8x32xf32, #tpu.memory_space<vmem>>, %arg2: memref<96x128xbf16, #tpu.memory_space<vmem>>, %arg3: memref<1x128xf32, #tpu.memory_space<vmem>>, %arg4: memref<8x128xbf16, #tpu.memory_space<vmem>>, %arg5: memref<1x2x128xf32, #tpu.memory_space<vmem>>) attributes {dimension_semantics = [#tpu.dimension_semantics<parallel>], iteration_bounds = array<i64: 2>, scalar_prefetch = 0 : i64, scratch_operands = 0 : i64, tpu.core_type = #tpu.core_type<tc>, window_params = [{transform_indices = @transform_0, window_bounds = array<i64: 4, 8, 32>}, {pipeline_mode = #tpu.pipeline_mode<synchronous>, transform_indices = @transform_1, window_bounds = array<i64: 96, 128>}, {pipeline_mode = #tpu.pipeline_mode<synchronous>, transform_indices = @transform_2, window_bounds = array<i64: 1, 128>}, {transform_indices = @transform_3, window_bounds = array<i64: 8, 128>}, {transform_indices = @transform_4, window_bounds = array<i64: 1, 2, 128>}]} {
    %c0 = arith.constant 0 : index
    %c0_0 = arith.constant 0 : index
    %c0_1 = arith.constant 0 : index
    %0 = vector.load %arg1[%c0, %c0_0, %c0_1] : memref<4x8x32xf32, #tpu.memory_space<vmem>>, vector<4x8x32xf32>
    %1 = vector.extract_strided_slice %0 {offsets = [0, 0, 0], sizes = [1, 8, 32], strides = [1, 1, 1]} : vector<4x8x32xf32> to vector<1x8x32xf32>
    %2 = vector.shape_cast %1 : vector<1x8x32xf32> to vector<8x32xf32>
    %3 = vector.extract_strided_slice %0 {offsets = [1, 0, 0], sizes = [1, 8, 32], strides = [1, 1, 1]} : vector<4x8x32xf32> to vector<1x8x32xf32>
    %4 = vector.shape_cast %3 : vector<1x8x32xf32> to vector<8x32xf32>
    %5 = arith.maximumf %2, %4 : vector<8x32xf32>
    %6 = vector.extract_strided_slice %0 {offsets = [2, 0, 0], sizes = [1, 8, 32], strides = [1, 1, 1]} : vector<4x8x32xf32> to vector<1x8x32xf32>
    %7 = vector.shape_cast %6 : vector<1x8x32xf32> to vector<8x32xf32>
    %8 = vector.extract_strided_slice %0 {offsets = [3, 0, 0], sizes = [1, 8, 32], strides = [1, 1, 1]} : vector<4x8x32xf32> to vector<1x8x32xf32>
    %9 = vector.shape_cast %8 : vector<1x8x32xf32> to vector<8x32xf32>
    %10 = arith.maximumf %7, %9 : vector<8x32xf32>
    %11 = arith.maximumf %5, %10 : vector<8x32xf32>
    %12 = arith.truncf %11 : vector<8x32xf32> to vector<8x32xbf16>
    %13 = vector.shape_cast %12 : vector<8x32xbf16> to vector<1x8x32xbf16>
    %cst = arith.constant 0.000000e+00 : bf16
    %14 = vector.broadcast %cst : bf16 to vector<1x1x32xbf16>
    %15 = vector.extract_strided_slice %13 {offsets = [0, 0, 0], sizes = [1, 7, 32], strides = [1, 1, 1]} : vector<1x8x32xbf16> to vector<1x7x32xbf16>
    %16 = tpu.concatenate %14, %15 in 1 : vector<1x1x32xbf16>, vector<1x7x32xbf16> -> vector<1x8x32xbf16>
    %17 = vector.shape_cast %16 : vector<1x8x32xbf16> to vector<8x32xbf16>
    %18 = vector.extract_strided_slice %13 {offsets = [0, 1, 0], sizes = [1, 7, 32], strides = [1, 1, 1]} : vector<1x8x32xbf16> to vector<1x7x32xbf16>
    %19 = tpu.concatenate %18, %14 in 1 : vector<1x7x32xbf16>, vector<1x1x32xbf16> -> vector<1x8x32xbf16>
    %20 = vector.shape_cast %19 : vector<1x8x32xbf16> to vector<8x32xbf16>
    %21 = tpu.concatenate %17, %12, %20 in 1 : vector<8x32xbf16>, vector<8x32xbf16>, vector<8x32xbf16> -> vector<8x96xbf16>
    %c0_2 = arith.constant 0 : index
    %c0_3 = arith.constant 0 : index
    %22 = vector.load %arg2[%c0_2, %c0_3] : memref<96x128xbf16, #tpu.memory_space<vmem>>, vector<96x128xbf16>
    %cst_4 = arith.constant dense<0.000000e+00> : vector<8x128xf32>
    %23 = tpu.matmul %21, %22, %cst_4 {dimension_numbers = #tpu.dot_dimension_numbers<[1], [0], [0], [1], [0, 0, 1, 1], [], []>} : vector<8x96xbf16>, vector<96x128xbf16>, vector<8x128xf32> -> vector<8x128xf32>
    %c0_5 = arith.constant 0 : index
    %c0_6 = arith.constant 0 : index
    %24 = vector.load %arg3[%c0_5, %c0_6] : memref<1x128xf32, #tpu.memory_space<vmem>>, vector<1x128xf32>
    %25 = vector.broadcast %24 : vector<1x128xf32> to vector<8x128xf32>
    %26 = arith.addf %23, %25 : vector<8x128xf32>
    %27 = arith.truncf %26 : vector<8x128xf32> to vector<8x128xbf16>
    %c0_7 = arith.constant 0 : index
    %c0_8 = arith.constant 0 : index
    %28 = vector.load %arg4[%c0_7, %c0_8] : memref<8x128xbf16, #tpu.memory_space<vmem>>, vector<8x128xbf16>
    tpu.vector_store %arg4[%c0_7, %c0_8], %27 {strides = array<i32>} : memref<8x128xbf16, #tpu.memory_space<vmem>>, vector<8x128xbf16>,
    %cst_9 = arith.constant dense<0.000000e+00> : vector<128xf32>
    %29 = vector.multi_reduction <add>, %26, %cst_9 [0] : vector<8x128xf32> to vector<128xf32>
    %c0_10 = arith.constant 0 : index
    %c0_11 = arith.constant 0 : index
    %c0_12 = arith.constant 0 : index
    %30 = vector.load %arg5[%c0_10, %c0_11, %c0_12] : memref<1x2x128xf32, #tpu.memory_space<vmem>>, vector<1x1x128xf32>
    %31 = vector.shape_cast %30 : vector<1x1x128xf32> to vector<128xf32>
    %32 = vector.shape_cast %29 : vector<128xf32> to vector<1x1x128xf32>
    tpu.vector_store %arg5[%c0_10, %c0_11, %c0_12], %32 {strides = array<i32>} : memref<1x2x128xf32, #tpu.memory_space<vmem>>, vector<1x1x128xf32>,
    %33 = arith.mulf %26, %26 : vector<8x128xf32>
    %cst_13 = arith.constant dense<0.000000e+00> : vector<128xf32>
    %34 = vector.multi_reduction <add>, %33, %cst_13 [0] : vector<8x128xf32> to vector<128xf32>
    %c0_14 = arith.constant 0 : index
    %c1 = arith.constant 1 : index
    %c0_15 = arith.constant 0 : index
    %35 = vector.load %arg5[%c0_14, %c1, %c0_15] : memref<1x2x128xf32, #tpu.memory_space<vmem>>, vector<1x1x128xf32>
    %36 = vector.shape_cast %35 : vector<1x1x128xf32> to vector<128xf32>
    %37 = vector.shape_cast %34 : vector<128xf32> to vector<1x1x128xf32>
    tpu.vector_store %arg5[%c0_14, %c1, %c0_15], %37 {strides = array<i32>} : memref<1x2x128xf32, #tpu.memory_space<vmem>>, vector<1x1x128xf32>,
    return
  }
  func.func @transform_0(%arg0: i32) -> (i32, i32, i32) {
    %c0_i32 = arith.constant 0 : i32
    %c0_i32_0 = arith.constant 0 : i32
    %c0_i32_1 = arith.constant 0 : i32
    return %c0_i32, %arg0, %c0_i32_0 : i32, i32, i32
  }
  func.func @transform_1(%arg0: i32) -> (i32, i32) {
    %c0_i32 = arith.constant 0 : i32
    %c0_i32_0 = arith.constant 0 : i32
    %c0_i32_1 = arith.constant 0 : i32
    return %c0_i32, %c0_i32_0 : i32, i32
  }
  func.func @transform_2(%arg0: i32) -> (i32, i32) {
    %c0_i32 = arith.constant 0 : i32
    %c0_i32_0 = arith.constant 0 : i32
    %c0_i32_1 = arith.constant 0 : i32
    return %c0_i32, %c0_i32_0 : i32, i32
  }
  func.func @transform_3(%arg0: i32) -> (i32, i32) {
    %c0_i32 = arith.constant 0 : i32
    %c0_i32_0 = arith.constant 0 : i32
    return %arg0, %c0_i32 : i32, i32
  }
  func.func @transform_4(%arg0: i32) -> (i32, i32, i32) {
    %c0_i32 = arith.constant 0 : i32
    %c0_i32_0 = arith.constant 0 : i32
    %c0_i32_1 = arith.constant 0 : i32
    return %arg0, %c0_i32, %c0_i32_0 : i32, i32, i32
  }
}

</mosaic_0001>

<llo_original>
// kernel: downsample_forward.1
$region0: #{downsample_forward.1}
  #allocation0 [shape = 'u32[]', space=smem, size = 0x4, offset = 0x4, fixed_abs, tag = 'smem constant byte address 0x4 - core index']
  #allocation1 [shape = 'u32[144,128]{1,0:T(1,128)}', space=vmem, size = 0x12000, scoped, tag = 'internal scratch']
  %s0 = inlined_call_operand.vmem [shape: f32[4,16,32], index: 0, kind: input, shape index: {}]
  %s1 = inlined_call_operand.vmem [shape: bf16[96,128], index: 1, kind: input, shape index: {}]
  %s2 = inlined_call_operand.vmem [shape: f32[1,128], index: 2, kind: input, shape index: {}]
  %s3 = inlined_call_operand.vmem [shape: bf16[16,128], index: 3, kind: output, shape index: {0}]
  %s4 = inlined_call_operand.vmem [shape: f32[2,2,128], index: 4, kind: output, shape index: {1}]
  %5 = xla_tuple %s3, %s4
  %s6 = sld [smem:[#allocation0]]
  $region91: #{downsample_forward.1} parent=0
    _
  %s8 = ssub.s32 1, %s6
  %s9 = scalar_select 0, %s8, %s6
  $region1: #{downsample_forward.1} parent=0
    #allocation2 [shape = 'u8[32768]{0}', space=vmem, size = 0x8000, scoped, tag = 'input window, operand 0']
    loop: start=0, step=1, limit=4
    $region2: #{downsample_forward.1} parent=1 // loop_pre_header
      _
    $region3: #{downsample_forward.1} parent=1 // loop_header
      %s11 = sphi 0, %s15
      %p12 = scmp.ge.s32.totalorder %s11, 4
      %s21 = sphi 0, %s23
      %s24 = sphi 0, %s21
      %s25 = sphi 0, %s24
      %s41 = sphi 0, %s25
      %s45 = sphi 0, %s45
      %s47 = sphi 0, %s45
      %s48 = sphi 0, %s47
      %s62 = sphi 0, %s48
      %s66 = sphi 0, %s66
      %s68 = sphi 0, %s66
      %s69 = sphi 0, %s68
      %s83 = sphi 0, %s69
      %s89 = sphi 0, %s91
      %s92 = sphi 0, %s89
      %s93 = sphi 0, %s92
      %s109 = sphi 0, %s93
      %s115 = sphi 0, %s117
      %s118 = sphi 0, %s115
      %s119 = sphi 0, %s118
      %s135 = sphi 0, %s119
    $region4: #{downsample_forward.1} parent=1 // loop_header_branch
      %14 = sbr.rel (%p12) target = $region8
    $region5: #{downsample_forward.1} parent=1 // loop_body
      %s16 = ssub.s32 %s11, 1
      %s17 = ssub.s32 %s11, 2
      %s18 = sadd.s32 %s11, 1
      %s19 = ssub.s32 %s11, %s18
      %p20 = scmp.eq.s32.totalorder %s19, 0
      %s22 = sadd.s32 %s21, 1
      %s23 = scalar_select %p20, %s21, %s22
      %p26 = pneg %p20
      %p27 = scmp.eq.s32.totalorder %s11, 1
      %p28 = por %p26, %p27
      %p29 = scmp.ne.s32.totalorder %s21, %s24
      %p30 = scmp.eq.s32.totalorder %s11, 0
      %p31 = por %p29, %p30
      %p32 = scmp.ne.s32.totalorder %s21, %s24
      %p33 = scmp.eq.s32.totalorder %s16, 1
      %p34 = por %p32, %p33
      %p35 = scmp.ne.s32.totalorder %s24, %s25
      %p36 = scmp.eq.s32.totalorder %s16, 0
      %p37 = por %p35, %p36
      %p38 = scmp.ne.s32.totalorder %s24, %s25
      %p39 = scmp.eq.s32.totalorder %s17, 1
      %p40 = por %p38, %p39
      %p42 = scmp.ne.s32.totalorder %s25, %s41
      %p43 = scmp.eq.s32.totalorder %s17, 0
      %p44 = por %p42, %p43
      %s46 = sadd.s32 %s45, 1
      %p49 = scmp.eq.s32.totalorder %s11, 1
      %p50 = scmp.ne.s32.totalorder %s45, %s47
      %p51 = scmp.eq.s32.totalorder %s11, 0
      %p52 = por %p50, %p51
      %p53 = scmp.ne.s32.totalorder %s45, %s47
      %p54 = scmp.eq.s32.totalorder %s16, 1
      %p55 = por %p53, %p54
      %p56 = scmp.ne.s32.totalorder %s47, %s48
      %p57 = scmp.eq.s32.totalorder %s16, 0
      %p58 = por %p56, %p57
      %p59 = scmp.ne.s32.totalorder %s47, %s48
      %p60 = scmp.eq.s32.totalorder %s17, 1
      %p61 = por %p59, %p60
      %p63 = scmp.ne.s32.totalorder %s48, %s62
      %p64 = scmp.eq.s32.totalorder %s17, 0
      %p65 = por %p63, %p64
      %s67 = sadd.s32 %s66, 1
      %p70 = scmp.eq.s32.totalorder %s11, 1
      %p71 = scmp.ne.s32.totalorder %s66, %s68
      %p72 = scmp.eq.s32.totalorder %s11, 0
      %p73 = por %p71, %p72
      %p74 = scmp.ne.s32.totalorder %s66, %s68
      %p75 = scmp.eq.s32.totalorder %s16, 1
      %p76 = por %p74, %p75
      %p77 = scmp.ne.s32.totalorder %s68, %s69
      %p78 = scmp.eq.s32.totalorder %s16, 0
      %p79 = por %p77, %p78
      %p80 = scmp.ne.s32.totalorder %s68, %s69
      %p81 = scmp.eq.s32.totalorder %s17, 1
      %p82 = por %p80, %p81
      %p84 = scmp.ne.s32.totalorder %s69, %s83
      %p85 = scmp.eq.s32.totalorder %s17, 0
      %p86 = por %p84, %p85
      %s87 = ssub.s32 %s11, %s18
      %p88 = scmp.eq.s32.totalorder %s87, 0
      %s90 = sadd.s32 %s89, 1
      %s91 = scalar_select %p88, %s89, %s90
      %p94 = pneg %p88
      %p95 = scmp.eq.s32.totalorder %s11, 1
      %p96 = por %p94, %p95
      %p97 = scmp.ne.s32.totalorder %s89, %s92
      %p98 = scmp.eq.s32.totalorder %s11, 0
      %p99 = por %p97, %p98
      %p100 = scmp.ne.s32.totalorder %s89, %s92
      %p101 = scmp.eq.s32.totalorder %s16, 1
      %p102 = por %p100, %p101
      %p103 = scmp.ne.s32.totalorder %s92, %s93
      %p104 = scmp.eq.s32.totalorder %s16, 0
      %p105 = por %p103, %p104
      %p106 = scmp.ne.s32.totalorder %s92, %s93
      %p107 = scmp.eq.s32.totalorder %s17, 1
      %p108 = por %p106, %p107
      %p110 = scmp.ne.s32.totalorder %s93, %s109
      %p111 = scmp.eq.s32.totalorder %s17, 0
      %p112 = por %p110, %p111
      %s113 = ssub.s32 %s11, %s18
      %p114 = scmp.eq.s32.totalorder %s113, 0
      %s116 = sadd.s32 %s115, 1
      %s117 = scalar_select %p114, %s115, %s116
      %p120 = pneg %p114
      %p121 = scmp.eq.s32.totalorder %s11, 1
      %p122 = por %p120, %p121
      %p123 = scmp.ne.s32.totalorder %s115, %s118
      %p124 = scmp.eq.s32.totalorder %s11, 0
      %p125 = por %p123, %p124
      %p126 = scmp.ne.s32.totalorder %s115, %s118
      %p127 = scmp.eq.s32.totalorder %s16, 1
      %p128 = por %p126, %p127
      %p129 = scmp.ne.s32.totalorder %s118, %s119
      %p130 = scmp.eq.s32.totalorder %s16, 0
      %p131 = por %p129, %p130
      %p132 = scmp.ne.s32.totalorder %s118, %s119
      %p133 = scmp.eq.s32.totalorder %s17, 1
      %p134 = por %p132, %p133
      %p136 = scmp.ne.s32.totalorder %s119, %s135
      %p137 = scmp.eq.s32.totalorder %s17, 0
      %p138 = por %p136, %p137
      %p139 = scmp.le.s32.totalorder 1, %s11
      %p140 = scmp.lt.s32.totalorder %s11, 3
      %p141 = pnand %p139, %p140
      %p142 = pneg %p141
      // Predicated region
      $region9: #{downsample_forward.1} parent=5 // pred_check
        _
      $region10: #{downsample_forward.1} parent=5 // pred_check_branch
        %144 = sbr.rel (%p141) target = $region12
      $region11: #{downsample_forward.1} parent=5 // pred_region
        %s145 = ssub.s32 %s11, 1
        // Predicated region
        $region13: #{downsample_forward.1} parent=11 // pred_check
          %p146 = pneg %p58
        $region14: #{downsample_forward.1} parent=11 // pred_check_branch
          %148 = sbr.rel (%p146) target = $region16
        $region15: #{downsample_forward.1} parent=11 // pred_region
          _
        $region16: #{downsample_forward.1} parent=11 // pred_fallthru
          _
        // Predicated region
        $region17: #{downsample_forward.1} parent=11 // pred_check
          %p149 = pneg %p79
        $region18: #{downsample_forward.1} parent=11 // pred_check_branch
          %151 = sbr.rel (%p149) target = $region20
        $region19: #{downsample_forward.1} parent=11 // pred_region
          _
        $region20: #{downsample_forward.1} parent=11 // pred_fallthru
          _
      $region12: #{downsample_forward.1} parent=5 // pred_fallthru
        _
      %p152 = scmp.lt.s32.totalorder %s11, 2
      // Predicated region
      $region21: #{downsample_forward.1} parent=5 // pred_check
        %p153 = pneg %p152
      $region22: #{downsample_forward.1} parent=5 // pred_check_branch
        %155 = sbr.rel (%p153) target = $region24
      $region23: #{downsample_forward.1} parent=5 // pred_region
        // Predicated region
        $region25: #{downsample_forward.1} parent=23 // pred_check
          %p156 = pneg %p31
        $region26: #{downsample_forward.1} parent=23 // pred_check_branch
          %158 = sbr.rel (%p156) target = $region28
        $region27: #{downsample_forward.1} parent=23 // pred_region
          %s159 = sand.u32 %s21, 1
          %s160 = sand.u32 %s21, 1
          %s161 = smul.addr %s160, 32
          %s162 = scalar_lea.vmem [#allocation2], %s161
          %s163 = smul.addr %s11, 8
          %s164 = scalar_lea.vmem %s0, %s163
          // Predicated region
          $region29: #{downsample_forward.1} parent=27 // pred_check
            _
          $region30: #{downsample_forward.1} parent=27 // pred_check_branch
            %166 = sbr.rel (0) target = $region32
          $region31: #{downsample_forward.1} parent=27 // pred_region
            // Predicated region
            $region33: #{downsample_forward.1} parent=31 // pred_check
              _
            $region34: #{downsample_forward.1} parent=31 // pred_check_branch
              %168 = sbr.rel (0) target = $region36
            $region35: #{downsample_forward.1} parent=31 // pred_region
              // Predicated region
              $region48: #{downsample_forward.1} parent=35 // pred_check
                _
              $region49: #{downsample_forward.1} parent=35 // pred_check_branch
                %189 = sbr.rel (0) target = $region51
              $region50: #{downsample_forward.1} parent=35 // pred_region
                loop: start=0, step=1, limit=1
                $region52: #{downsample_forward.1} parent=50 // loop_pre_header
                  _
                $region53: #{downsample_forward.1} parent=50 // loop_header
                  %s191 = sphi 0, %s195
                  %p192 = scmp.ge.s32.totalorder %s191, 1
                  %s196 = sphi %s164, %s164
                  %s197 = sphi %s162, %s162
                $region54: #{downsample_forward.1} parent=50 // loop_header_branch
                  %194 = sbr.rel (%p192) target = $region58
                $region55: #{downsample_forward.1} parent=50 // loop_body
                  %v198 = vld [vmem:[%s196] sm:$0xff]
                  %199 = vst [vmem:[%s197] sm:$0xff] %v198
                  %v200 = vld [vmem:[%s196 + $0x10] sm:$0xff]
                  %201 = vst [vmem:[%s197 + $0x8] sm:$0xff] %v200
                  %v202 = vld [vmem:[%s196 + $0x20] sm:$0xff]
                  %203 = vst [vmem:[%s197 + $0x10] sm:$0xff] %v202
                  %v204 = vld [vmem:[%s196 + $0x30] sm:$0xff]
                  %205 = vst [vmem:[%s197 + $0x18] sm:$0xff] %v204
                $region56: #{downsample_forward.1} parent=50 // loop_footer
                  %s195 = sadd.s32 1, %s191
                $region57: #{downsample_forward.1} parent=50 // loop_footer_branch
                  %190 = sbr.rel target = $region53
                $region58: #{downsample_forward.1} parent=50 // loop_exit
                  _
              $region51: #{downsample_forward.1} parent=35 // pred_fallthru
                _
              // Predicated region
              $region59: #{downsample_forward.1} parent=35 // pred_check
                _
              $region60: #{downsample_forward.1} parent=35 // pred_check_branch
                %207 = sbr.rel target = $region62
              $region61: #{downsample_forward.1} parent=35 // pred_region
                _
              $region62: #{downsample_forward.1} parent=35 // pred_fallthru
                _
            $region36: #{downsample_forward.1} parent=31 // pred_fallthru
              _
            // Predicated region
            $region37: #{downsample_forward.1} parent=31 // pred_check
              _
            $region38: #{downsample_forward.1} parent=31 // pred_check_branch
              %170 = sbr.rel target = $region40
            $region39: #{downsample_forward.1} parent=31 // pred_region
              loop: start=0, step=1, limit=1
              $region41: #{downsample_forward.1} parent=39 // loop_pre_header
                _
              $region42: #{downsample_forward.1} parent=39 // loop_header
                %s173 = sphi 0, %s177
                %p174 = scmp.ge.s32.totalorder %s173, 1
                %s178 = sphi %s164, %s164
                %s179 = sphi %s162, %s162
              $region43: #{downsample_forward.1} parent=39 // loop_header_branch
                %176 = sbr.rel (%p174) target = $region47
              $region44: #{downsample_forward.1} parent=39 // loop_body
                %v180 = vld [vmem:[%s178] sm:$0xff]
                %181 = vst [vmem:[%s179] sm:$0xff] %v180
                %v182 = vld [vmem:[%s178 + $0x10] sm:$0xff]
                %183 = vst [vmem:[%s179 + $0x8] sm:$0xff] %v182
                %v184 = vld [vmem:[%s178 + $0x20] sm:$0xff]
                %185 = vst [vmem:[%s179 + $0x10] sm:$0xff] %v184
                %v186 = vld [vmem:[%s178 + $0x30] sm:$0xff]
                %187 = vst [vmem:[%s179 + $0x18] sm:$0xff] %v186
              $region45: #{downsample_forward.1} parent=39 // loop_footer
                %s177 = sadd.s32 1, %s173
              $region46: #{downsample_forward.1} parent=39 // loop_footer_branch
                %172 = sbr.rel target = $region42
              $region47: #{downsample_forward.1} parent=39 // loop_exit
                _
            $region40: #{downsample_forward.1} parent=31 // pred_fallthru
              _
          $region32: #{downsample_forward.1} parent=27 // pred_fallthru
            _
          %208 = vnop
        $region28: #{downsample_forward.1} parent=23 // pred_fallthru
          _
      $region24: #{downsample_forward.1} parent=5 // pred_fallthru
        _
      %p209 = scmp.le.s32.totalorder 1, %s11
      %p210 = scmp.lt.s32.totalorder %s11, 3
      %p211 = pnand %p209, %p210
      %p212 = pneg %p211
      // Predicated region
      $region63: #{downsample_forward.1} parent=5 // pred_check
        _
      $region64: #{downsample_forward.1} parent=5 // pred_check_branch
        %214 = sbr.rel (%p211) target = $region66
      $region65: #{downsample_forward.1} parent=5 // pred_region
        %s215 = ssub.s32 %s11, 1
        %s216 = sand.u32 %s24, 1
        %s217 = sand.u32 %s24, 1
        %s218 = smul.addr %s217, 32
        %s219 = scalar_lea.vmem [#allocation2], %s218
        // Predicated region
        $region67: #{downsample_forward.1} parent=65 // pred_check
          %p220 = pneg %p37
        $region68: #{downsample_forward.1} parent=65 // pred_check_branch
          %222 = sbr.rel (%p220) target = $region70
        $region69: #{downsample_forward.1} parent=65 // pred_region
          _
        $region70: #{downsample_forward.1} parent=65 // pred_fallthru
          _
        %s223 = sand.u32 %s24, 1
        %s224 = sand.u32 %s24, 1
        %s225 = smul.addr %s224, 32
        %s226 = scalar_lea.vmem [#allocation2], %s225
        %p227 = pneg %p37
        %p228 = pneg %p34
        %p229 = pneg %p58
        %p230 = pneg %p55
        %p231 = pneg %p79
        %p232 = pneg %p76
        %p233 = pneg %p105
        %p234 = pneg %p102
        %p235 = scmp.lt.s32.totalorder %s16, 1
        %s236 = scalar_select %p235, %s16, 1
        %s237 = smul.addr %s236, 4
        %s238 = scalar_lea.vmem %s3, %s237
        %p239 = pneg %p131
        %p240 = pneg %p128
        %p241 = scmp.lt.s32.totalorder %s16, 1
        %s242 = scalar_select %p241, %s16, 1
        %s243 = smul.addr %s242, 2
        %s244 = scalar_lea.vmem %s4, %s243
        %p245 = scmp.lt.s32.totalorder %s16, 1
        %s246 = scalar_select %p245, %s16, 1
        %s247 = smul.addr %s246, 4
        %s248 = scalar_lea.vmem %s3, %s247
        %p249 = scmp.lt.s32.totalorder %s16, 1
        %s250 = scalar_select %p249, %s16, 1
        %s251 = smul.addr %s250, 2
        %s252 = scalar_lea.vmem %s4, %s251
        %v254 = vld [vmem:[%s219] sm:$0xff]
        %v255 = vld [vmem:[%s219 + $0x8] sm:$0xff]
        %v256 = vld [vmem:[%s219 + $0x10] sm:$0xff]
        %v257 = vld [vmem:[%s219 + $0x18] sm:$0xff]
        %v258 = vmax.f32 %v254, %v255
        %v259 = vmax.f32 %v256, %v257
        %v260 = vmax.f32 %v258, %v259
        %v261 = vpack.c.bf16 %v260, %v260
        %v263 = vshrl.u32 %v261, 16
        %v265 = vrot.slane %v263, 7
        %v266 = vshll.u32 %v261, 16
        %v268 = vor.u32 %v265, %v266
        %vm270 = vcmask 1040384
        %vm271 = vsmask.f32 256
        %vm272 = vmand %vm270, %vm271
        %v273 = vsel %vm272, 0, %v268
        %v274 = vrot.slane %v266, 1
        %v275 = vor.u32 %v263, %v274
        %vm277 = vcmask 1043456
        %vm278 = vsmask.f32 3328
        %vm279 = vmand %vm277, %vm278
        %v280 = vsel %vm279, %v275, 0
        %282 = vrot.lane.b32.xlu0 %v261, 32
        %v283 = vpop.permute.xlu0 %282
        %285 = vrot.lane.b32.xlu0 %v280, 64
        %v286 = vpop.permute.xlu0 %285
        %vm287 = vcmask 261120
        %v290 = vsel %vm287, %v273, %v283
        %vm291 = vcmask 523264
        %v293 = vsel %vm291, %v290, %v286
        %v294 = vld [vmem:[%s1] sm:$0xf]
        %v295 = vld [vmem:[%s1 + $0x4] sm:$0xf]
        %v296 = vld [vmem:[%s1 + $0x8] sm:$0xf]
        %v297 = vld [vmem:[%s1 + $0xc] sm:$0xf]
        %v298 = vld [vmem:[%s1 + $0x10] sm:$0xf]
        %v299 = vld [vmem:[%s1 + $0x14] sm:$0xf]
        %v300 = vld [vmem:[%s1 + $0x18] sm:$0xf]
        %v301 = vld [vmem:[%s1 + $0x1c] sm:$0xf]
        %v302 = vld [vmem:[%s1 + $0x20] sm:$0xf]
        %v303 = vld [vmem:[%s1 + $0x24] sm:$0xf]
        %v304 = vld [vmem:[%s1 + $0x28] sm:$0xf]
        %v305 = vld [vmem:[%s1 + $0x2c] sm:$0xf]
        %v306 = vld [vmem:[%s2] sm:$0x1]
        %v308 = vlaneseq
        %v309 = vshrl.u32 %v308, 7
        %v310 = vsub.s32 0, %v309
        %v311 = vrot.slane %v306, %v310
        %v325 = vunpack.c.l.b16 %v294
        %v326 = vunpack.c.l.b16 %v295
        %v327 = vunpack.c.l.b16 %v296
        %v328 = vunpack.c.l.b16 %v297
        %v329 = vunpack.c.l.b16 %v298
        %v330 = vunpack.c.l.b16 %v299
        %v331 = vunpack.c.l.b16 %v300
        %v332 = vunpack.c.l.b16 %v301
        %v333 = vunpack.c.l.b16 %v302
        %v334 = vunpack.c.l.b16 %v303
        %v335 = vunpack.c.l.b16 %v304
        %v336 = vunpack.c.l.b16 %v305
        %v337 = vpack.c.b16 %v326, %v325
        %v338 = vpack.c.b16 %v328, %v327
        %v339 = vpack.c.b16 %v330, %v329
        %v340 = vpack.c.b16 %v332, %v331
        %v341 = vpack.c.b16 %v334, %v333
        %v342 = vpack.c.b16 %v336, %v335
        %vm349 = vcmask 785408
        %v350 = vsel %vm349, %v293, 0
        %352 = vmatprep.subr.bf16.mxu0 0
        %353 = vmatpush1.bf16.msra.mxu0 %v337
        %354 = vmatprep.subr.bf16.mxu0 0
        %355 = vmatpush1.bf16.msra.mxu0 %v338
        %356 = vmatprep.subr.bf16.mxu0 0
        %357 = vmatpush1.bf16.msra.mxu0 %v339
        %358 = vmatprep.subr.bf16.mxu0 0
        %359 = vmatpush1.bf16.msra.mxu0 %v340
        %360 = vmatprep.subr.bf16.mxu0 0
        %361 = vmatpush1.bf16.msra.mxu0 %v341
        %362 = vmatprep.subr.bf16.mxu0 0
        %363 = vmatpush1.bf16.msra.mxu0 %v342
        %364 = vmatprep.subr.bf16.mxu0 0
        %365 = vmatpush1.bf16.msra.mxu0 0
        %366 = vmatprep.subr.bf16.mxu0 0
        %367 = vmatpush1.bf16.msra.mxu0 0
        %368 = vmatprep.subr.bf16.mxu0 0
        %369 = vmatpush1.bf16.msra.mxu0 0
        %370 = vmatprep.subr.bf16.mxu0 0
        %371 = vmatpush1.bf16.msra.mxu0 0
        %372 = vmatprep.subr.bf16.mxu0 0
        %373 = vmatpush1.bf16.msra.mxu0 0
        %374 = vmatprep.subr.bf16.mxu0 0
        %375 = vmatpush1.bf16.msra.mxu0 0
        %376 = vmatprep.subr.bf16.mxu0 0
        %377 = vmatpush1.bf16.msra.mxu0 0
        %378 = vmatprep.subr.bf16.mxu0 0
        %379 = vmatpush1.bf16.msra.mxu0 0
        %380 = vmatprep.subr.bf16.mxu0 0
        %381 = vmatpush1.bf16.msra.mxu0 0
        %382 = vmatprep.subr.bf16.mxu0 0
        %383 = vmatpush1.bf16.msra.mxu0 0
        %384 = vmatprep.mubr.bf16.mxu0 0
        %385 = vmatmul.mubr.bf16.gmra.mrb[0].mxu0 %v350
        %v386 = vpop.f32.mrb[0].mxu0
        %v387 = vadd.f32 %v311, %v386
        %v388 = vpop.f32.mrb[0].mxu0
        %v389 = vpop.f32.mrb[0].mxu0
        %v390 = vpop.f32.mrb[0].mxu0
        %391 = vdwg.mxu0
        %v392 = vpack.c.bf16 %v387, %v387
        %393 = vst [vmem:[%s248] sm:$0xf] %v392
        %v394 = vrot.slane %v387, 4
        %v395 = vadd.f32 %v387, %v394
        %v396 = vrot.slane %v395, 2
        %v397 = vadd.f32 %v395, %v396
        %v398 = vrot.slane %v397, 1
        %v399 = vadd.f32 %v397, %v398
        %400 = vst [vmem:[%s252] sm:$0x1] %v399
        %v401 = vmul.f32 %v387, %v387
        %v402 = vrot.slane %v401, 4
        %v403 = vadd.f32 %v401, %v402
        %v404 = vrot.slane %v403, 2
        %v405 = vadd.f32 %v403, %v404
        %v406 = vrot.slane %v405, 1
        %v407 = vadd.f32 %v405, %v406
        %408 = vst [vmem:[%s252 + $0x1] sm:$0x1] %v407
        %p409 = scmp.lt.s32.totalorder %s16, 1
        %s410 = scalar_select %p409, %s16, 1
        %s411 = smul.addr %s410, 4
        %s412 = scalar_lea.vmem %s3, %s411
        %p413 = scmp.lt.s32.totalorder %s16, 1
        %s414 = scalar_select %p413, %s16, 1
        %s415 = smul.addr %s414, 2
        %s416 = scalar_lea.vmem %s4, %s415
        // Predicated region
        $region71: #{downsample_forward.1} parent=65 // pred_check
          %p417 = pneg %p102
        $region72: #{downsample_forward.1} parent=65 // pred_check_branch
          %419 = sbr.rel (%p417) target = $region74
        $region73: #{downsample_forward.1} parent=65 // pred_region
          _
        $region74: #{downsample_forward.1} parent=65 // pred_fallthru
          _
        // Predicated region
        $region75: #{downsample_forward.1} parent=65 // pred_check
          %p420 = pneg %p128
        $region76: #{downsample_forward.1} parent=65 // pred_check_branch
          %422 = sbr.rel (%p420) target = $region78
        $region77: #{downsample_forward.1} parent=65 // pred_region
          _
        $region78: #{downsample_forward.1} parent=65 // pred_fallthru
          _
      $region66: #{downsample_forward.1} parent=5 // pred_fallthru
        _
      %p423 = scmp.le.s32.totalorder 2, %s11
      // Predicated region
      $region79: #{downsample_forward.1} parent=5 // pred_check
        %p424 = pneg %p423
      $region80: #{downsample_forward.1} parent=5 // pred_check_branch
        %426 = sbr.rel (%p424) target = $region82
      $region81: #{downsample_forward.1} parent=5 // pred_region
        %s427 = ssub.s32 %s11, 2
        // Predicated region
        $region83: #{downsample_forward.1} parent=81 // pred_check
          %p428 = pneg %p108
        $region84: #{downsample_forward.1} parent=81 // pred_check_branch
          %430 = sbr.rel (%p428) target = $region86
        $region85: #{downsample_forward.1} parent=81 // pred_region
          %p431 = scmp.lt.s32.totalorder %s17, 1
          %s432 = scalar_select %p431, %s17, 1
          %s433 = smul.addr %s432, 4
          %s434 = scalar_lea.vmem %s3, %s433
        $region86: #{downsample_forward.1} parent=81 // pred_fallthru
          _
        // Predicated region
        $region87: #{downsample_forward.1} parent=81 // pred_check
          %p435 = pneg %p134
        $region88: #{downsample_forward.1} parent=81 // pred_check_branch
          %437 = sbr.rel (%p435) target = $region90
        $region89: #{downsample_forward.1} parent=81 // pred_region
          %p438 = scmp.lt.s32.totalorder %s17, 1
          %s439 = scalar_select %p438, %s17, 1
          %s440 = smul.addr %s439, 2
          %s441 = scalar_lea.vmem %s4, %s440
        $region90: #{downsample_forward.1} parent=81 // pred_fallthru
          _
      $region82: #{downsample_forward.1} parent=5 // pred_fallthru
        _
    $region6: #{downsample_forward.1} parent=1 // loop_footer
      %s15 = sadd.s32 1, %s11
    $region7: #{downsample_forward.1} parent=1 // loop_footer_branch
      %10 = sbr.rel target = $region3
    $region8: #{downsample_forward.1} parent=1 // loop_exit
      _

</llo_original>
